<compile_context>
chip_gen: v7x
topology: tpu7x:2x2x1
jax: 0.10.0
libtpu: 0.0.40
codegen_flags: <defaults>
</compile_context>

<pallas_src>
import jax
import jax.numpy as jnp
from jax.experimental import pallas as pl
from jax.experimental.pallas import tpu as pltpu

LANE = 128  # TPU vreg lane width; output slab width.


def _round_up(n, m):
    return ((n + m - 1) // m) * m


def qnetwork_kernel(x_ref, a_ref,
                    w1x_ref, w1a_ref, b1_ref,
                    w2_ref, b2_ref,
                    w3_ref, b3_ref,
                    o_ref):
    # Layer 1: concat-free — two MXU matmuls over the split feature axis.
    h1 = (jnp.dot(x_ref[...], w1x_ref[...], preferred_element_type=jnp.float32)
          + jnp.dot(a_ref[...], w1a_ref[...], preferred_element_type=jnp.float32)
          + b1_ref[...])
    h1 = jnp.maximum(h1, 0.0)

    # Layer 2: MXU matmul (operands may be bf16; accumulation stays f32).
    h2 = (jnp.dot(h1.astype(w2_ref.dtype), w2_ref[...],
                  preferred_element_type=jnp.float32)
          + b2_ref[...])
    h2 = jnp.maximum(h2, 0.0)

    # Layer 3: single output unit -> VPU multiply + reduce (keeps the MXU free),
    # all in f32.
    q = jnp.sum(h2 * w3_ref[...], axis=-1, keepdims=True) + b3_ref[...]

    # Lane-dense store: broadcast q across the 128-lane output slab so the
    # store is an unmasked full-width vst; the wrapper slices column 0.
    o_ref[...] = jnp.broadcast_to(q, o_ref.shape).astype(o_ref.dtype)


def prepare_params(params, obs_dim, compute_dtype=jnp.float32):
    """One-time conversion of PyTorch-convention params to kernel layout.

    params: w1 [H, OBS+ACT], b1 [H], w2 [H, H], b2 [H], w3 [1, H], b3 [1].
    Hoisted out of the per-call path: transposes, the layer-1 split, bias
    reshapes and (optionally) the bf16 cast of the MXU operands.
    """
    w1 = params["w1"]
    return dict(
        w1x=jnp.asarray(w1[:, :obs_dim].T, dtype=compute_dtype),   # [OBS, H]
        w1a=jnp.asarray(w1[:, obs_dim:].T, dtype=compute_dtype),   # [ACT, H]
        b1=params["b1"].reshape(1, -1).astype(jnp.float32),        # [1, H]
        w2=jnp.asarray(params["w2"].T, dtype=compute_dtype),       # [H, H]
        b2=params["b2"].reshape(1, -1).astype(jnp.float32),        # [1, H]
        w3=params["w3"].reshape(1, -1).astype(jnp.float32),        # [1, H]
        b3=params["b3"].reshape(1, -1).astype(jnp.float32),        # [1, 1]
    )


def qnetwork_forward(x, a, kp, *, tile_b=256):
    """Pallas-backed QNetwork.forward(x, a) with prepared params `kp`."""
    B, obs_dim = x.shape
    act_dim = a.shape[1]
    hidden = kp["w2"].shape[1]
    cdt = kp["w1x"].dtype

    # Batch tile: multiple of 8 (f32) / 16 (bf16); pad ragged batches.
    min_tile = 16 if cdt == jnp.bfloat16 else 8
    tile_b = max(min_tile, min(tile_b, _round_up(B, min_tile)))
    b_pad = _round_up(B, tile_b)

    x = x.astype(cdt)
    a = a.astype(cdt)
    if b_pad != B:
        x = jnp.pad(x, ((0, b_pad - B), (0, 0)))
        a = jnp.pad(a, ((0, b_pad - B), (0, 0)))

    batch = lambda i: (i, 0)   # batch-tiled operands
    const = lambda i: (0, 0)   # weights / biases: DMA'd once, VMEM-resident

    out = pl.pallas_call(
        qnetwork_kernel,
        out_shape=jax.ShapeDtypeStruct((b_pad, LANE), jnp.float32),
        grid_spec=pltpu.PrefetchScalarGridSpec(
            num_scalar_prefetch=0,
            grid=(b_pad // tile_b,),
            in_specs=[
                pl.BlockSpec((tile_b, obs_dim), batch),
                pl.BlockSpec((tile_b, act_dim), batch),
                pl.BlockSpec((obs_dim, hidden), const),
                pl.BlockSpec((act_dim, hidden), const),
                pl.BlockSpec((1, hidden), const),
                pl.BlockSpec((hidden, hidden), const),
                pl.BlockSpec((1, hidden), const),
                pl.BlockSpec((1, hidden), const),
                pl.BlockSpec((1, 1), const),
            ],
            out_specs=pl.BlockSpec((tile_b, LANE), batch),
        ),
        compiler_params=pltpu.CompilerParams(
            dimension_semantics=("parallel",)),
    )(x, a, kp["w1x"], kp["w1a"], kp["b1"], kp["w2"], kp["b2"],
      kp["w3"], kp["b3"])

    # Lane-dense slab -> [B, 1] column (cheap wrapper-side slice).
    return out[:B, :1]


def init_params(key, obs_dim, act_dim, hidden):
    """Deterministic init mimicking torch.nn.Linear default (uniform +-1/sqrt(fan_in))."""
    ks = jax.random.split(key, 6)
    in1 = obs_dim + act_dim

    def lin(kw, kb, fan_in, fan_out):
        bound = 1.0 / jnp.sqrt(jnp.float32(fan_in))
        w = jax.random.uniform(kw, (fan_out, fan_in), jnp.float32, -bound, bound)
        b = jax.random.uniform(kb, (fan_out,), jnp.float32, -bound, bound)
        return w, b

    w1, b1 = lin(ks[0], ks[1], in1, hidden)
    w2, b2 = lin(ks[2], ks[3], hidden, hidden)
    w3, b3 = lin(ks[4], ks[5], hidden, 1)
    return dict(w1=w1, b1=b1, w2=w2, b2=b2, w3=w3, b3=b3)


def reference_forward(x, a, params):
    xa = jnp.concatenate([x, a], axis=1)
    h1 = jnp.maximum(xa @ params["w1"].T + params["b1"], 0.0)
    h2 = jnp.maximum(h1 @ params["w2"].T + params["b2"], 0.0)
    return h2 @ params["w3"].T + params["b3"]


if __name__ == "__main__":
    B, OBS_DIM, ACT_DIM, HIDDEN = 8, 16, 8, 32

    key = jax.random.PRNGKey(0)
    kx, ka, kp = jax.random.split(key, 3)
    x = jax.random.normal(kx, (B, OBS_DIM), jnp.float32)
    a = jax.random.normal(ka, (B, ACT_DIM), jnp.float32)
    torch_params = init_params(kp, OBS_DIM, ACT_DIM, HIDDEN)

    q_ref = reference_forward(x, a, torch_params)

    fwd = jax.jit(qnetwork_forward)

    # f32 path: exact PyTorch semantics (tight tolerance).
    p_f32 = prepare_params(torch_params, OBS_DIM, compute_dtype=jnp.float32)
    q_f32 = fwd(x, a, p_f32)
    jax.block_until_ready(q_f32)
    assert q_f32.shape == (B, 1)
    assert jnp.allclose(q_f32, q_ref, atol=1e-5, rtol=1e-5)

    # bf16-MXU path (v6e/v7x): bf16 operands, f32 accumulation (loose tolerance).
    p_bf16 = prepare_params(torch_params, OBS_DIM, compute_dtype=jnp.bfloat16)
    q_bf16 = fwd(x, a, p_bf16)
    jax.block_until_ready(q_bf16)
    assert q_bf16.shape == (B, 1)
    assert jnp.allclose(q_bf16, q_ref, atol=5e-2, rtol=5e-2)

    print("KERNEL_OK")
</pallas_src>

<mosaic_0001>
module attributes {stable_mosaic.version = 11 : i64} {
  func.func @qnetwork_kernel(%arg0: i32, %arg1: memref<8x16xf32, #tpu.memory_space<vmem>>, %arg2: memref<8x8xf32, #tpu.memory_space<vmem>>, %arg3: memref<16x32xf32, #tpu.memory_space<vmem>>, %arg4: memref<8x32xf32, #tpu.memory_space<vmem>>, %arg5: memref<1x32xf32, #tpu.memory_space<vmem>>, %arg6: memref<32x32xf32, #tpu.memory_space<vmem>>, %arg7: memref<1x32xf32, #tpu.memory_space<vmem>>, %arg8: memref<1x32xf32, #tpu.memory_space<vmem>>, %arg9: memref<1x1xf32, #tpu.memory_space<vmem>>, %arg10: memref<8x128xf32, #tpu.memory_space<vmem>>) attributes {dimension_semantics = [#tpu.dimension_semantics<parallel>], iteration_bounds = array<i64: 1>, scalar_prefetch = 0 : i64, scratch_operands = 0 : i64, tpu.core_type = #tpu.core_type<tc>, window_params = [{transform_indices = @transform_0, window_bounds = array<i64: 8, 16>}, {transform_indices = @transform_1, window_bounds = array<i64: 8, 8>}, {pipeline_mode = #tpu.pipeline_mode<synchronous>, transform_indices = @transform_2, window_bounds = array<i64: 16, 32>}, {pipeline_mode = #tpu.pipeline_mode<synchronous>, transform_indices = @transform_3, window_bounds = array<i64: 8, 32>}, {pipeline_mode = #tpu.pipeline_mode<synchronous>, transform_indices = @transform_4, window_bounds = array<i64: 1, 32>}, {pipeline_mode = #tpu.pipeline_mode<synchronous>, transform_indices = @transform_5, window_bounds = array<i64: 32, 32>}, {pipeline_mode = #tpu.pipeline_mode<synchronous>, transform_indices = @transform_6, window_bounds = array<i64: 1, 32>}, {pipeline_mode = #tpu.pipeline_mode<synchronous>, transform_indices = @transform_7, window_bounds = array<i64: 1, 32>}, {pipeline_mode = #tpu.pipeline_mode<synchronous>, transform_indices = @transform_8, window_bounds = array<i64: 1, 1>}, {transform_indices = @transform_9, window_bounds = array<i64: 8, 128>}]} {
    %c0 = arith.constant 0 : index
    %c0_0 = arith.constant 0 : index
    %0 = vector.load %arg1[%c0, %c0_0] : memref<8x16xf32, #tpu.memory_space<vmem>>, vector<8x16xf32>
    %c0_1 = arith.constant 0 : index
    %c0_2 = arith.constant 0 : index
    %1 = vector.load %arg3[%c0_1, %c0_2] : memref<16x32xf32, #tpu.memory_space<vmem>>, vector<16x32xf32>
    %cst = arith.constant dense<0.000000e+00> : vector<8x32xf32>
    %2 = tpu.matmul %0, %1, %cst {dimension_numbers = #tpu.dot_dimension_numbers<[1], [0], [0], [1], [0, 0, 1, 1], [], []>} : vector<8x16xf32>, vector<16x32xf32>, vector<8x32xf32> -> vector<8x32xf32>
    %c0_3 = arith.constant 0 : index
    %c0_4 = arith.constant 0 : index
    %3 = vector.load %arg2[%c0_3, %c0_4] : memref<8x8xf32, #tpu.memory_space<vmem>>, vector<8x8xf32>
    %c0_5 = arith.constant 0 : index
    %c0_6 = arith.constant 0 : index
    %4 = vector.load %arg4[%c0_5, %c0_6] : memref<8x32xf32, #tpu.memory_space<vmem>>, vector<8x32xf32>
    %cst_7 = arith.constant dense<0.000000e+00> : vector<8x32xf32>
    %5 = tpu.matmul %3, %4, %cst_7 {dimension_numbers = #tpu.dot_dimension_numbers<[1], [0], [0], [1], [0, 0, 1, 1], [], []>} : vector<8x8xf32>, vector<8x32xf32>, vector<8x32xf32> -> vector<8x32xf32>
    %6 = arith.addf %2, %5 : vector<8x32xf32>
    %c0_8 = arith.constant 0 : index
    %c0_9 = arith.constant 0 : index
    %7 = vector.load %arg5[%c0_8, %c0_9] : memref<1x32xf32, #tpu.memory_space<vmem>>, vector<1x32xf32>
    %8 = vector.broadcast %7 : vector<1x32xf32> to vector<8x32xf32>
    %9 = arith.addf %6, %8 : vector<8x32xf32>
    %cst_10 = arith.constant 0.000000e+00 : f32
    %10 = vector.broadcast %cst_10 : f32 to vector<8x32xf32>
    %11 = arith.maximumf %9, %10 : vector<8x32xf32>
    %c0_11 = arith.constant 0 : index
    %c0_12 = arith.constant 0 : index
    %12 = vector.load %arg6[%c0_11, %c0_12] : memref<32x32xf32, #tpu.memory_space<vmem>>, vector<32x32xf32>
    %cst_13 = arith.constant dense<0.000000e+00> : vector<8x32xf32>
    %13 = tpu.matmul %11, %12, %cst_13 {dimension_numbers = #tpu.dot_dimension_numbers<[1], [0], [0], [1], [0, 0, 1, 1], [], []>} : vector<8x32xf32>, vector<32x32xf32>, vector<8x32xf32> -> vector<8x32xf32>
    %c0_14 = arith.constant 0 : index
    %c0_15 = arith.constant 0 : index
    %14 = vector.load %arg7[%c0_14, %c0_15] : memref<1x32xf32, #tpu.memory_space<vmem>>, vector<1x32xf32>
    %15 = vector.broadcast %14 : vector<1x32xf32> to vector<8x32xf32>
    %16 = arith.addf %13, %15 : vector<8x32xf32>
    %cst_16 = arith.constant 0.000000e+00 : f32
    %17 = vector.broadcast %cst_16 : f32 to vector<8x32xf32>
    %18 = arith.maximumf %16, %17 : vector<8x32xf32>
    %c0_17 = arith.constant 0 : index
    %c0_18 = arith.constant 0 : index
    %19 = vector.load %arg8[%c0_17, %c0_18] : memref<1x32xf32, #tpu.memory_space<vmem>>, vector<1x32xf32>
    %20 = vector.broadcast %19 : vector<1x32xf32> to vector<8x32xf32>
    %21 = arith.mulf %18, %20 : vector<8x32xf32>
    %cst_19 = arith.constant dense<0.000000e+00> : vector<8xf32>
    %22 = vector.multi_reduction <add>, %21, %cst_19 [1] : vector<8x32xf32> to vector<8xf32>
    %23 = vector.shape_cast %22 : vector<8xf32> to vector<8x1xf32>
    %c0_20 = arith.constant 0 : index
    %c0_21 = arith.constant 0 : index
    %24 = vector.load %arg9[%c0_20, %c0_21] : memref<1x1xf32, #tpu.memory_space<vmem>>, vector<1x1xf32>
    %25 = vector.broadcast %24 : vector<1x1xf32> to vector<8x1xf32>
    %26 = arith.addf %23, %25 : vector<8x1xf32>
    %27 = vector.shape_cast %26 : vector<8x1xf32> to vector<8x1xf32>
    %28 = vector.broadcast %27 : vector<8x1xf32> to vector<8x128xf32>
    %c0_22 = arith.constant 0 : index
    %c0_23 = arith.constant 0 : index
    %29 = vector.load %arg10[%c0_22, %c0_23] : memref<8x128xf32, #tpu.memory_space<vmem>>, vector<8x128xf32>
    tpu.vector_store %arg10[%c0_22, %c0_23], %28 {strides = array<i32>} : memref<8x128xf32, #tpu.memory_space<vmem>>, vector<8x128xf32>,
    return
  }
  func.func @transform_0(%arg0: i32) -> (i32, i32) {
    %c0_i32 = arith.constant 0 : i32
    %c0_i32_0 = arith.constant 0 : i32
    return %arg0, %c0_i32 : i32, i32
  }
  func.func @transform_1(%arg0: i32) -> (i32, i32) {
    %c0_i32 = arith.constant 0 : i32
    %c0_i32_0 = arith.constant 0 : i32
    return %arg0, %c0_i32 : i32, i32
  }
  func.func @transform_2(%arg0: i32) -> (i32, i32) {
    %c0_i32 = arith.constant 0 : i32
    %c0_i32_0 = arith.constant 0 : i32
    %c0_i32_1 = arith.constant 0 : i32
    return %c0_i32, %c0_i32_0 : i32, i32
  }
  func.func @transform_3(%arg0: i32) -> (i32, i32) {
    %c0_i32 = arith.constant 0 : i32
    %c0_i32_0 = arith.constant 0 : i32
    %c0_i32_1 = arith.constant 0 : i32
    return %c0_i32, %c0_i32_0 : i32, i32
  }
  func.func @transform_4(%arg0: i32) -> (i32, i32) {
    %c0_i32 = arith.constant 0 : i32
    %c0_i32_0 = arith.constant 0 : i32
    %c0_i32_1 = arith.constant 0 : i32
    return %c0_i32, %c0_i32_0 : i32, i32
  }
  func.func @transform_5(%arg0: i32) -> (i32, i32) {
    %c0_i32 = arith.constant 0 : i32
    %c0_i32_0 = arith.constant 0 : i32
    %c0_i32_1 = arith.constant 0 : i32
    return %c0_i32, %c0_i32_0 : i32, i32
  }
  func.func @transform_6(%arg0: i32) -> (i32, i32) {
    %c0_i32 = arith.constant 0 : i32
    %c0_i32_0 = arith.constant 0 : i32
    %c0_i32_1 = arith.constant 0 : i32
    return %c0_i32, %c0_i32_0 : i32, i32
  }
  func.func @transform_7(%arg0: i32) -> (i32, i32) {
    %c0_i32 = arith.constant 0 : i32
    %c0_i32_0 = arith.constant 0 : i32
    %c0_i32_1 = arith.constant 0 : i32
    return %c0_i32, %c0_i32_0 : i32, i32
  }
  func.func @transform_8(%arg0: i32) -> (i32, i32) {
    %c0_i32 = arith.constant 0 : i32
    %c0_i32_0 = arith.constant 0 : i32
    %c0_i32_1 = arith.constant 0 : i32
    return %c0_i32, %c0_i32_0 : i32, i32
  }
  func.func @transform_9(%arg0: i32) -> (i32, i32) {
    %c0_i32 = arith.constant 0 : i32
    %c0_i32_0 = arith.constant 0 : i32
    return %arg0, %c0_i32 : i32, i32
  }
}

</mosaic_0001>

<llo_original>
// kernel: qnetwork_forward.1
$region0: #{qnetwork_forward.1}
  #allocation0 [shape = 'u32[]', space=smem, size = 0x4, offset = 0x4, fixed_abs, tag = 'smem constant byte address 0x4 - core index']
  #allocation1 [shape = 'u32[144,128]{1,0:T(1,128)}', space=vmem, size = 0x12000, scoped, tag = 'internal scratch']
  #allocation2 [shape = 'f32[1,1]{1,0:T(1,128)S(1)}', space=vmem, size = 0x200, scoped, tag = 'scoped memory for qnetwork_forward.1']
  %s0 = inlined_call_operand.hbm [shape: f32[8,16], index: 0, kind: input, shape index: {}]
  %s1 = inlined_call_operand.hbm [shape: f32[8,8], index: 1, kind: input, shape index: {}]
  %s2 = inlined_call_operand.vmem [shape: f32[16,32], index: 2, kind: input, shape index: {}]
  %s3 = inlined_call_operand.hbm [shape: f32[8,32], index: 3, kind: input, shape index: {}]
  %s4 = inlined_call_operand.vmem [shape: f32[1,32], index: 4, kind: input, shape index: {}]
  %s5 = inlined_call_operand.hbm [shape: f32[32,32], index: 5, kind: input, shape index: {}]
  %s6 = inlined_call_operand.vmem [shape: f32[1,32], index: 6, kind: input, shape index: {}]
  %s7 = inlined_call_operand.vmem [shape: f32[1,32], index: 7, kind: input, shape index: {}]
  %s8 = inlined_call_operand.<no memory space> [shape: f32[1,1], index: 8, kind: input, shape index: {}]
  %s9 = inlined_call_operand.vmem [shape: f32[8,128], index: 9, kind: output, shape index: {}]
  %s10 = sld [smem:[#allocation0]]
  $region62: #{qnetwork_forward.1} parent=0
    _
  %s12 = ssub.s32 1, %s10
  %s13 = scalar_select 0, %s12, %s10
  %v14 = vstv %s8
  %15 = vst [vmem:[#allocation2] sm:$0x1] %v14
  $region1: #{qnetwork_forward.1} parent=0
    #allocation3 [shape = 'u8[4096]{0}', space=vmem, size = 0x1000, scoped, tag = 'input window, operand 0, single buffered']
    #allocation4 [shape = 's32[1]{0}', space=sflag, size = 0x4, scoped, tag = 'scoped memory for qnetwork_forward.1']
    #allocation5 [shape = 'u8[4096]{0}', space=vmem, size = 0x1000, scoped, tag = 'input window, operand 1, single buffered']
    #allocation6 [shape = 's32[1]{0}', space=sflag, size = 0x4, scoped, tag = 'scoped memory for qnetwork_forward.1']
    #allocation7 [shape = 'u8[4096]{0}', space=vmem, size = 0x1000, scoped, tag = 'input window, operand 3, single buffered']
    #allocation8 [shape = 'u8[16384]{0}', space=vmem, size = 0x4000, scoped, tag = 'input window, operand 5, single buffered']
    #allocation9 [shape = 's32[1]{0}', space=sflag, size = 0x4, scoped, tag = 'scoped memory for qnetwork_forward.1']
    %16 = vsyncpa [#allocation4], 0
    %17 = vsyncpa [#allocation6], 0
    %18 = vsyncpa [#allocation9], 0
    // Predicated region
    $region2: #{qnetwork_forward.1} parent=1 // pred_check
      _
    $region3: #{qnetwork_forward.1} parent=1 // pred_check_branch
      %20 = sbr.rel (0) target = $region5
    $region4: #{qnetwork_forward.1} parent=1 // pred_region
      %s22 = ssub.s32 128, 128
      %23 = vsyncadd [#allocation4], %s22
      %s25 = sshll.u32 [#allocation3], 4
      %s26 = int_to_ptr.vmem [resolvable:$true] %s25
      %28 = dma.hbm_to_vmem [thread:$0]  %s0, 128, %s26, [#allocation4]
    $region5: #{qnetwork_forward.1} parent=1 // pred_fallthru
      _
    // Predicated region
    $region6: #{qnetwork_forward.1} parent=1 // pred_check
      _
    $region7: #{qnetwork_forward.1} parent=1 // pred_check_branch
      %30 = sbr.rel (0) target = $region9
    $region8: #{qnetwork_forward.1} parent=1 // pred_region
      %s32 = ssub.s32 128, 128
      %33 = vsyncadd [#allocation6], %s32
      %s35 = sshll.u32 [#allocation5], 4
      %s36 = int_to_ptr.vmem [resolvable:$true] %s35
      %38 = dma.hbm_to_vmem [thread:$0]  %s1, 128, %s36, [#allocation6]
    $region9: #{qnetwork_forward.1} parent=1 // pred_fallthru
      _
    // Predicated region
    $region10: #{qnetwork_forward.1} parent=1 // pred_check
      _
    $region11: #{qnetwork_forward.1} parent=1 // pred_check_branch
      %40 = sbr.rel (0) target = $region13
    $region12: #{qnetwork_forward.1} parent=1 // pred_region
      _
    $region13: #{qnetwork_forward.1} parent=1 // pred_fallthru
      _
    // Predicated region
    $region14: #{qnetwork_forward.1} parent=1 // pred_check
      _
    $region15: #{qnetwork_forward.1} parent=1 // pred_check_branch
      %42 = sbr.rel (0) target = $region17
    $region16: #{qnetwork_forward.1} parent=1 // pred_region
      %s44 = ssub.s32 128, 128
      %45 = vsyncadd [#allocation6], %s44
      %s47 = sshll.u32 [#allocation7], 4
      %s48 = int_to_ptr.vmem [resolvable:$true] %s47
      %50 = dma.hbm_to_vmem [thread:$0]  %s3, 128, %s48, [#allocation6]
    $region17: #{qnetwork_forward.1} parent=1 // pred_fallthru
      _
    // Predicated region
    $region18: #{qnetwork_forward.1} parent=1 // pred_check
      _
    $region19: #{qnetwork_forward.1} parent=1 // pred_check_branch
      %52 = sbr.rel (0) target = $region21
    $region20: #{qnetwork_forward.1} parent=1 // pred_region
      _
    $region21: #{qnetwork_forward.1} parent=1 // pred_fallthru
      _
    // Predicated region
    $region22: #{qnetwork_forward.1} parent=1 // pred_check
      _
    $region23: #{qnetwork_forward.1} parent=1 // pred_check_branch
      %54 = sbr.rel (0) target = $region25
    $region24: #{qnetwork_forward.1} parent=1 // pred_region
      %s56 = ssub.s32 512, 512
      %57 = vsyncadd [#allocation9], %s56
      %s58 = sshll.u32 [#allocation8], 4
      %s59 = int_to_ptr.vmem [resolvable:$true] %s58
      %64 = dma.hbm_to_vmem [thread:$0]  %s5, 512, %s59, [#allocation9], 128, 128, 8
    $region25: #{qnetwork_forward.1} parent=1 // pred_fallthru
      _
    // Predicated region
    $region26: #{qnetwork_forward.1} parent=1 // pred_check
      _
    $region27: #{qnetwork_forward.1} parent=1 // pred_check_branch
      %66 = sbr.rel (0) target = $region29
    $region28: #{qnetwork_forward.1} parent=1 // pred_region
      _
    $region29: #{qnetwork_forward.1} parent=1 // pred_fallthru
      _
    // Predicated region
    $region30: #{qnetwork_forward.1} parent=1 // pred_check
      _
    $region31: #{qnetwork_forward.1} parent=1 // pred_check_branch
      %68 = sbr.rel (0) target = $region33
    $region32: #{qnetwork_forward.1} parent=1 // pred_region
      _
    $region33: #{qnetwork_forward.1} parent=1 // pred_fallthru
      _
    // Predicated region
    $region34: #{qnetwork_forward.1} parent=1 // pred_check
      _
    $region35: #{qnetwork_forward.1} parent=1 // pred_check_branch
      %70 = sbr.rel (0) target = $region37
    $region36: #{qnetwork_forward.1} parent=1 // pred_region
      _
    $region37: #{qnetwork_forward.1} parent=1 // pred_fallthru
      _
    // Predicated region
    $region38: #{qnetwork_forward.1} parent=1 // pred_check
      _
    $region39: #{qnetwork_forward.1} parent=1 // pred_check_branch
      %72 = sbr.rel (0) target = $region41
    $region40: #{qnetwork_forward.1} parent=1 // pred_region
      %73 = dma.done [#allocation4], 128
    $region41: #{qnetwork_forward.1} parent=1 // pred_fallthru
      _
    // Predicated region
    $region42: #{qnetwork_forward.1} parent=1 // pred_check
      _
    $region43: #{qnetwork_forward.1} parent=1 // pred_check_branch
      %75 = sbr.rel (0) target = $region45
    $region44: #{qnetwork_forward.1} parent=1 // pred_region
      %76 = dma.done [#allocation6], 128
    $region45: #{qnetwork_forward.1} parent=1 // pred_fallthru
      _
    // Predicated region
    $region46: #{qnetwork_forward.1} parent=1 // pred_check
      _
    $region47: #{qnetwork_forward.1} parent=1 // pred_check_branch
      %78 = sbr.rel (0) target = $region49
    $region48: #{qnetwork_forward.1} parent=1 // pred_region
      %79 = dma.done [#allocation6], 128
    $region49: #{qnetwork_forward.1} parent=1 // pred_fallthru
      _
    // Predicated region
    $region50: #{qnetwork_forward.1} parent=1 // pred_check
      _
    $region51: #{qnetwork_forward.1} parent=1 // pred_check_branch
      %81 = sbr.rel (0) target = $region53
    $region52: #{qnetwork_forward.1} parent=1 // pred_region
      %82 = dma.done [#allocation9], 512
    $region53: #{qnetwork_forward.1} parent=1 // pred_fallthru
      _
    %v83 = vld [vmem:[#allocation3] sm:$0xff]
    %v84 = vld [vmem:[%s2] sm:$0xff]
    %v85 = vld [vmem:[%s2 + $0x8] sm:$0xff]
    %v86 = vld [vmem:[#allocation5] sm:$0xff]
    %v87 = vld [vmem:[#allocation7] sm:$0xff]
    %vm88 = vcmask 64512
    %v90 = vsel %vm88, %v86, 0
    %92 = vmatprep.subr.mxu0 0.0
    %93 = vmatpush1.msra.mxu0 %v87
    %94 = vmatprep.subr.mxu0 0.0
    %95 = vmatpush1.msra.mxu0 0.0
    %96 = vmatprep.subr.mxu0 0.0
    %97 = vmatpush1.msra.mxu0 0.0
    %98 = vmatprep.subr.mxu0 0.0
    %99 = vmatpush1.msra.mxu0 0.0
    %100 = vmatprep.subr.mxu0 0.0
    %101 = vmatpush1.msra.mxu0 0.0
    %102 = vmatprep.subr.mxu0 0.0
    %103 = vmatpush1.msra.mxu0 0.0
    %104 = vmatprep.subr.mxu0 0.0
    %105 = vmatpush1.msra.mxu0 0.0
    %106 = vmatprep.subr.mxu0 0.0
    %107 = vmatpush1.msra.mxu0 0.0
    %108 = vmatprep.subr.mxu0 0.0
    %109 = vmatpush1.msra.mxu0 0.0
    %110 = vmatprep.subr.mxu0 0.0
    %111 = vmatpush1.msra.mxu0 0.0
    %112 = vmatprep.subr.mxu0 0.0
    %113 = vmatpush1.msra.mxu0 0.0
    %114 = vmatprep.subr.mxu0 0.0
    %115 = vmatpush1.msra.mxu0 0.0
    %116 = vmatprep.subr.mxu0 0.0
    %117 = vmatpush1.msra.mxu0 0.0
    %118 = vmatprep.subr.mxu0 0.0
    %119 = vmatpush1.msra.mxu0 0.0
    %120 = vmatprep.subr.mxu0 0.0
    %121 = vmatpush1.msra.mxu0 0.0
    %122 = vmatprep.subr.mxu0 0.0
    %123 = vmatpush1.msra.mxu0 0.0
    %124 = vmatprep.subr.mxu0 0.0
    %125 = vmatpush1.msra.mxu0 0.0
    %126 = vmatprep.subr.mxu0 0.0
    %127 = vmatpush1.msra.mxu0 0.0
    %128 = vmatprep.subr.mxu0 0.0
    %129 = vmatpush1.msra.mxu0 0.0
    %130 = vmatprep.subr.mxu0 0.0
    %131 = vmatpush1.msra.mxu0 0.0
    %132 = vmatprep.subr.mxu0 0.0
    %133 = vmatpush1.msra.mxu0 0.0
    %134 = vmatprep.subr.mxu0 0.0
    %135 = vmatpush1.msra.mxu0 0.0
    %136 = vmatprep.subr.mxu0 0.0
    %137 = vmatpush1.msra.mxu0 0.0
    %138 = vmatprep.subr.mxu0 0.0
    %139 = vmatpush1.msra.mxu0 0.0
    %140 = vmatprep.subr.mxu0 0.0
    %141 = vmatpush1.msra.mxu0 0.0
    %142 = vmatprep.subr.mxu0 0.0
    %143 = vmatpush1.msra.mxu0 0.0
    %144 = vmatprep.subr.mxu0 0.0
    %145 = vmatpush1.msra.mxu0 0.0
    %146 = vmatprep.subr.mxu0 0.0
    %147 = vmatpush1.msra.mxu0 0.0
    %148 = vmatprep.subr.mxu0 0.0
    %149 = vmatpush1.msra.mxu0 0.0
    %150 = vmatprep.subr.mxu0 0.0
    %151 = vmatpush1.msra.mxu0 0.0
    %152 = vmatprep.subr.mxu0 0.0
    %153 = vmatpush1.msra.mxu0 0.0
    %154 = vmatprep.subr.mxu0 0.0
    %155 = vmatpush1.msra.mxu0 0.0
    %156 = vmatprep.mubr.f32.mxu0 0.0
    %157 = vmatmul.mubr.f32.gmra.mrb[0].mxu0 %v90
    %v158 = vpop.f32.mrb[0].mxu0
    %v159 = vadd.f32 0.0, %v158
    %v160 = vpop.f32.mrb[0].mxu0
    %161 = vdwg.mxu0
    %vm162 = vcmask 130048
    %v164 = vsel %vm162, %v83, 0
    %166 = vmatprep.subr.mxu0 0.0
    %167 = vmatpush1.msra.mxu0 %v84
    %168 = vmatprep.subr.mxu0 0.0
    %169 = vmatpush1.msra.mxu0 %v85
    %170 = vmatprep.subr.mxu0 0.0
    %171 = vmatpush1.msra.mxu0 0.0
    %172 = vmatprep.subr.mxu0 0.0
    %173 = vmatpush1.msra.mxu0 0.0
    %174 = vmatprep.subr.mxu0 0.0
    %175 = vmatpush1.msra.mxu0 0.0
    %176 = vmatprep.subr.mxu0 0.0
    %177 = vmatpush1.msra.mxu0 0.0
    %178 = vmatprep.subr.mxu0 0.0
    %179 = vmatpush1.msra.mxu0 0.0
    %180 = vmatprep.subr.mxu0 0.0
    %181 = vmatpush1.msra.mxu0 0.0
    %182 = vmatprep.subr.mxu0 0.0
    %183 = vmatpush1.msra.mxu0 0.0
    %184 = vmatprep.subr.mxu0 0.0
    %185 = vmatpush1.msra.mxu0 0.0
    %186 = vmatprep.subr.mxu0 0.0
    %187 = vmatpush1.msra.mxu0 0.0
    %188 = vmatprep.subr.mxu0 0.0
    %189 = vmatpush1.msra.mxu0 0.0
    %190 = vmatprep.subr.mxu0 0.0
    %191 = vmatpush1.msra.mxu0 0.0
    %192 = vmatprep.subr.mxu0 0.0
    %193 = vmatpush1.msra.mxu0 0.0
    %194 = vmatprep.subr.mxu0 0.0
    %195 = vmatpush1.msra.mxu0 0.0
    %196 = vmatprep.subr.mxu0 0.0
    %197 = vmatpush1.msra.mxu0 0.0
    %198 = vmatprep.subr.mxu0 0.0
    %199 = vmatpush1.msra.mxu0 0.0
    %200 = vmatprep.subr.mxu0 0.0
    %201 = vmatpush1.msra.mxu0 0.0
    %202 = vmatprep.subr.mxu0 0.0
    %203 = vmatpush1.msra.mxu0 0.0
    %204 = vmatprep.subr.mxu0 0.0
    %205 = vmatpush1.msra.mxu0 0.0
    %206 = vmatprep.subr.mxu0 0.0
    %207 = vmatpush1.msra.mxu0 0.0
    %208 = vmatprep.subr.mxu0 0.0
    %209 = vmatpush1.msra.mxu0 0.0
    %210 = vmatprep.subr.mxu0 0.0
    %211 = vmatpush1.msra.mxu0 0.0
    %212 = vmatprep.subr.mxu0 0.0
    %213 = vmatpush1.msra.mxu0 0.0
    %214 = vmatprep.subr.mxu0 0.0
    %215 = vmatpush1.msra.mxu0 0.0
    %216 = vmatprep.subr.mxu0 0.0
    %217 = vmatpush1.msra.mxu0 0.0
    %218 = vmatprep.subr.mxu0 0.0
    %219 = vmatpush1.msra.mxu0 0.0
    %220 = vmatprep.subr.mxu0 0.0
    %221 = vmatpush1.msra.mxu0 0.0
    %222 = vmatprep.subr.mxu0 0.0
    %223 = vmatpush1.msra.mxu0 0.0
    %224 = vmatprep.subr.mxu0 0.0
    %225 = vmatpush1.msra.mxu0 0.0
    %226 = vmatprep.subr.mxu0 0.0
    %227 = vmatpush1.msra.mxu0 0.0
    %228 = vmatprep.subr.mxu0 0.0
    %229 = vmatpush1.msra.mxu0 0.0
    %230 = vmatprep.mubr.f32.mxu0 0.0
    %231 = vmatmul.mubr.f32.gmra.mrb[0].mxu0 %v164
    %v232 = vpop.f32.mrb[0].mxu0
    %v233 = vadd.f32 %v159, %v232
    %v234 = vpop.f32.mrb[0].mxu0
    %235 = vdwg.mxu0
    %v236 = vld [vmem:[%s4] sm:$0x1]
    %v238 = vlaneseq
    %v239 = vshrl.u32 %v238, 7
    %v240 = vsub.s32 0, %v239
    %v241 = vrot.slane %v236, %v240
    %v243 = vadd.f32 %v233, %v241
    %v244 = vmax.f32 %v243, 0.0
    %v245 = vld [vmem:[#allocation8] sm:$0xff]
    %v246 = vld [vmem:[#allocation8 + $0x8] sm:$0xff]
    %v247 = vld [vmem:[#allocation8 + $0x10] sm:$0xff]
    %v248 = vld [vmem:[#allocation8 + $0x18] sm:$0xff]
    %v249 = vld [vmem:[%s6] sm:$0x1]
    %v251 = vlaneseq
    %v252 = vshrl.u32 %v251, 7
    %v253 = vsub.s32 0, %v252
    %v254 = vrot.slane %v249, %v253
    %vm256 = vcmask 261120
    %v258 = vsel %vm256, %v244, 0
    %260 = vmatprep.subr.mxu0 0.0
    %261 = vmatpush1.msra.mxu0 %v245
    %262 = vmatprep.subr.mxu0 0.0
    %263 = vmatpush1.msra.mxu0 %v246
    %264 = vmatprep.subr.mxu0 0.0
    %265 = vmatpush1.msra.mxu0 %v247
    %266 = vmatprep.subr.mxu0 0.0
    %267 = vmatpush1.msra.mxu0 %v248
    %268 = vmatprep.subr.mxu0 0.0
    %269 = vmatpush1.msra.mxu0 0.0
    %270 = vmatprep.subr.mxu0 0.0
    %271 = vmatpush1.msra.mxu0 0.0
    %272 = vmatprep.subr.mxu0 0.0
    %273 = vmatpush1.msra.mxu0 0.0
    %274 = vmatprep.subr.mxu0 0.0
    %275 = vmatpush1.msra.mxu0 0.0
    %276 = vmatprep.subr.mxu0 0.0
    %277 = vmatpush1.msra.mxu0 0.0
    %278 = vmatprep.subr.mxu0 0.0
    %279 = vmatpush1.msra.mxu0 0.0
    %280 = vmatprep.subr.mxu0 0.0
    %281 = vmatpush1.msra.mxu0 0.0
    %282 = vmatprep.subr.mxu0 0.0
    %283 = vmatpush1.msra.mxu0 0.0
    %284 = vmatprep.subr.mxu0 0.0
    %285 = vmatpush1.msra.mxu0 0.0
    %286 = vmatprep.subr.mxu0 0.0
    %287 = vmatpush1.msra.mxu0 0.0
    %288 = vmatprep.subr.mxu0 0.0
    %289 = vmatpush1.msra.mxu0 0.0
    %290 = vmatprep.subr.mxu0 0.0
    %291 = vmatpush1.msra.mxu0 0.0
    %292 = vmatprep.subr.mxu0 0.0
    %293 = vmatpush1.msra.mxu0 0.0
    %294 = vmatprep.subr.mxu0 0.0
    %295 = vmatpush1.msra.mxu0 0.0
    %296 = vmatprep.subr.mxu0 0.0
    %297 = vmatpush1.msra.mxu0 0.0
    %298 = vmatprep.subr.mxu0 0.0
    %299 = vmatpush1.msra.mxu0 0.0
    %300 = vmatprep.subr.mxu0 0.0
    %301 = vmatpush1.msra.mxu0 0.0
    %302 = vmatprep.subr.mxu0 0.0
    %303 = vmatpush1.msra.mxu0 0.0
    %304 = vmatprep.subr.mxu0 0.0
    %305 = vmatpush1.msra.mxu0 0.0
    %306 = vmatprep.subr.mxu0 0.0
    %307 = vmatpush1.msra.mxu0 0.0
    %308 = vmatprep.subr.mxu0 0.0
    %309 = vmatpush1.msra.mxu0 0.0
    %310 = vmatprep.subr.mxu0 0.0
    %311 = vmatpush1.msra.mxu0 0.0
    %312 = vmatprep.subr.mxu0 0.0
    %313 = vmatpush1.msra.mxu0 0.0
    %314 = vmatprep.subr.mxu0 0.0
    %315 = vmatpush1.msra.mxu0 0.0
    %316 = vmatprep.subr.mxu0 0.0
    %317 = vmatpush1.msra.mxu0 0.0
    %318 = vmatprep.subr.mxu0 0.0
    %319 = vmatpush1.msra.mxu0 0.0
    %320 = vmatprep.subr.mxu0 0.0
    %321 = vmatpush1.msra.mxu0 0.0
    %322 = vmatprep.subr.mxu0 0.0
    %323 = vmatpush1.msra.mxu0 0.0
    %324 = vmatprep.mubr.f32.mxu0 0.0
    %325 = vmatmul.mubr.f32.gmra.mrb[0].mxu0 %v258
    %v326 = vpop.f32.mrb[0].mxu0
    %v327 = vadd.f32 %v254, %v326
    %v328 = vpop.f32.mrb[0].mxu0
    %329 = vdwg.mxu0
    %v330 = vmax.f32 %v327, 0.0
    %v331 = vld [vmem:[%s7] sm:$0x1]
    %v333 = vlaneseq
    %v334 = vshrl.u32 %v333, 7
    %v335 = vsub.s32 0, %v334
    %v336 = vrot.slane %v331, %v335
    %v338 = vmul.f32 %v330, %v336
    %v339 = vsel %vm256, %v338, 0.0
    %340 = vadd.xlane.f32.xlu0 %v339
    %v341 = vpop.xlane.xlu0 %340
    %v342 = vld [vmem:[#allocation2] sm:$0x1]
    %v344 = vlaneseq
    %v345 = vshrl.u32 %v344, 7
    %v346 = vsub.s32 0, %v345
    %v347 = vrot.slane %v342, %v346
    %v349 = vadd.f32 %v341, %v347
    %351 = vset.pattern.permute.xlu0 0
    %352 = vperm.xlu0 %351, %v349
    %v353 = vpop.permute.xlu0 %352
    %355 = vst [vmem:[%s9] sm:$0xff] %v353
    // Predicated region
    $region54: #{qnetwork_forward.1} parent=1 // pred_check
      _
    $region55: #{qnetwork_forward.1} parent=1 // pred_check_branch
      %357 = sbr.rel (0) target = $region57
    $region56: #{qnetwork_forward.1} parent=1 // pred_region
      _
    $region57: #{qnetwork_forward.1} parent=1 // pred_fallthru
      _
    // Predicated region
    $region58: #{qnetwork_forward.1} parent=1 // pred_check
      _
    $region59: #{qnetwork_forward.1} parent=1 // pred_check_branch
      %359 = sbr.rel (0) target = $region61
    $region60: #{qnetwork_forward.1} parent=1 // pred_region
      _
    $region61: #{qnetwork_forward.1} parent=1 // pred_fallthru
      _
    %360 = vsyncpa [#allocation4], 1
    %361 = vsyncpa [#allocation6], 1
    %362 = vsyncpa [#allocation9], 1

</llo_original>
